<compile_context>
chip_gen: v7x
topology: tpu7x:2x2x1
jax: 0.10.0
libtpu: 0.0.40
codegen_flags: <defaults>
</compile_context>

<pallas_src>
import functools

import jax
import jax.numpy as jnp
from jax.experimental import pallas as pl
from jax.experimental.pallas import tpu as pltpu


# ---------------------------------------------------------------------------
# Single forward evaluation kernel (batch-gridded, weights resident in VMEM).
# ---------------------------------------------------------------------------
def node_t_kernel(q_ref, qdot_ref, u_ref,
                  w_cos_ref, w_sin_ref, w_qd_ref, w_u_ref, b_in_ref,
                  *rest, d_f, n_hidden):
    if n_hidden > 0:
        w_h_ref, b_h_ref, w_out_ref, b_out_ref, out_ref = rest
    else:
        w_out_ref, b_out_ref, out_ref = rest

    q = q_ref[...]                                    # [tb, d_f]
    q_dot = qdot_ref[...]                             # [tb, d_f]
    u = u_ref[...]                                    # [tb, 1]

    # First layer without any lane-axis concatenate: sum of small MXU pushes
    # plus a VPU broadcast for the width-1 control column.
    pre = (jnp.dot(jnp.cos(q), w_cos_ref[...], preferred_element_type=jnp.float32)
           + jnp.dot(jnp.sin(q), w_sin_ref[...], preferred_element_type=jnp.float32)
           + jnp.dot(q_dot, w_qd_ref[...], preferred_element_type=jnp.float32)
           + u * w_u_ref[...]
           + b_in_ref[...])
    h = jnp.tanh(pre)

    for layer in range(n_hidden):                     # static unroll
        h = jnp.tanh(
            jnp.dot(h, w_h_ref[layer], preferred_element_type=jnp.float32)
            + b_h_ref[layer])

    ddx_dt = (jnp.dot(h, w_out_ref[...], preferred_element_type=jnp.float32)
              + b_out_ref[...])                       # [tb, d_f]

    # dx_dt = cat(q_dot, ddx_dt, zeros) -- written as direct slice stores.
    out_ref[:, :d_f] = q_dot.astype(out_ref.dtype)
    out_ref[:, d_f:2 * d_f] = ddx_dt.astype(out_ref.dtype)
    out_ref[:, 2 * d_f:] = jnp.zeros(q_dot.shape, out_ref.dtype)


def node_t_forward(t, x, params, *, d_f, u_index, block_b=256):
    """Pallas wrapper mirroring NODE_T.forward(t, x)."""
    del t  # time is unused by the module's forward
    w_in, b_in, w_h, b_h, w_out, b_out = params
    B = x.shape[0]
    H = w_in.shape[1]
    n_hidden = w_h.shape[0]
    dtype = x.dtype

    # Free XLA-level slicing / weight splitting (hoisted out of the kernel).
    q = x[:, :d_f]
    q_dot = x[:, d_f:2 * d_f]
    u = x[:, 2 * d_f + u_index][:, None]              # [B, 1]
    w_cos = w_in[:d_f]
    w_sin = w_in[d_f:2 * d_f]
    w_qd = w_in[2 * d_f:3 * d_f]
    w_u = w_in[3 * d_f:3 * d_f + 1]

    # Batch tiling: whole batch in one block when small, otherwise tile + pad.
    if B <= block_b:
        tb, n_blocks, pad = B, 1, 0
    else:
        tb = block_b
        n_blocks = pl.cdiv(B, tb)
        pad = n_blocks * tb - B
        if pad:
            q = jnp.pad(q, ((0, pad), (0, 0)))
            q_dot = jnp.pad(q_dot, ((0, pad), (0, 0)))
            u = jnp.pad(u, ((0, pad), (0, 0)))
    Bp = B + pad

    def bspec(feat):
        return pl.BlockSpec((tb, feat), lambda i: (i, 0))

    def wspec(shape):
        # Full-array block, constant index_map -> weights resident in VMEM.
        n = len(shape)
        return pl.BlockSpec(shape, lambda i, _n=n: (0,) * _n)

    in_specs = [bspec(d_f), bspec(d_f), bspec(1),
                wspec(w_cos.shape), wspec(w_sin.shape), wspec(w_qd.shape),
                wspec(w_u.shape), wspec(b_in.shape)]
    args = [q, q_dot, u, w_cos, w_sin, w_qd, w_u, b_in]
    if n_hidden > 0:
        in_specs += [wspec(w_h.shape), wspec(b_h.shape)]
        args += [w_h, b_h]
    in_specs += [wspec(w_out.shape), wspec(b_out.shape)]
    args += [w_out, b_out]

    params_in = 3 * d_f + 1
    weight_elems = (w_in.size + b_in.size + w_h.size + b_h.size
                    + w_out.size + b_out.size)
    cost = pl.CostEstimate(
        flops=int(2 * Bp * (params_in * H + n_hidden * H * H + H * d_f)),
        transcendentals=int(Bp * (2 * d_f + (n_hidden + 1) * H)),
        bytes_accessed=int(4 * (Bp * (2 * d_f + 1) + weight_elems
                                + Bp * 3 * d_f)),
    )

    kernel = functools.partial(node_t_kernel, d_f=d_f, n_hidden=n_hidden)
    out = pl.pallas_call(
        kernel,
        grid=(n_blocks,),
        out_shape=jax.ShapeDtypeStruct((Bp, 3 * d_f), dtype),
        in_specs=in_specs,
        out_specs=bspec(3 * d_f),
        compiler_params=pltpu.CompilerParams(
            dimension_semantics=("parallel",)),
        cost_estimate=cost,
    )(*args)
    return out[:B] if pad else out


# ---------------------------------------------------------------------------
# Fused explicit-Euler rollout: whole solver loop in ONE pallas_call,
# weights loaded once and kept on-chip for every step.
# ---------------------------------------------------------------------------
def node_t_euler_kernel(q_ref, qdot_ref, u_ref,
                        w_cos_ref, w_sin_ref, w_qd_ref, w_u_ref, b_in_ref,
                        *rest, n_hidden, n_steps, dt):
    if n_hidden > 0:
        w_h_ref, b_h_ref, w_out_ref, b_out_ref, q_out_ref, qd_out_ref = rest
    else:
        w_out_ref, b_out_ref, q_out_ref, qd_out_ref = rest

    # Load weights once; resident for the whole rollout.
    w_cos = w_cos_ref[...]
    w_sin = w_sin_ref[...]
    w_qd = w_qd_ref[...]
    b_in = b_in_ref[...]
    w_out = w_out_ref[...]
    b_out = b_out_ref[...]
    hidden = [(w_h_ref[l], b_h_ref[l]) for l in range(n_hidden)]
    # Control column push is constant across steps (du_dt = 0) -> hoist it.
    u_push = u_ref[...] * w_u_ref[...]                # [B, H]

    def mlp(q, q_dot):
        h = jnp.tanh(
            jnp.dot(jnp.cos(q), w_cos, preferred_element_type=jnp.float32)
            + jnp.dot(jnp.sin(q), w_sin, preferred_element_type=jnp.float32)
            + jnp.dot(q_dot, w_qd, preferred_element_type=jnp.float32)
            + u_push + b_in)
        for w_l, b_l in hidden:
            h = jnp.tanh(jnp.dot(h, w_l, preferred_element_type=jnp.float32)
                         + b_l)
        return jnp.dot(h, w_out, preferred_element_type=jnp.float32) + b_out

    def step(_, carry):
        q, q_dot = carry
        ddx = mlp(q, q_dot)
        return (q + dt * q_dot, q_dot + dt * ddx)

    q0 = q_ref[...].astype(jnp.float32)
    qd0 = qdot_ref[...].astype(jnp.float32)
    qf, qdf = jax.lax.fori_loop(0, n_steps, step, (q0, qd0))
    q_out_ref[...] = qf.astype(q_out_ref.dtype)
    qd_out_ref[...] = qdf.astype(qd_out_ref.dtype)


def node_t_euler_rollout(x0, params, *, d_f, u_index, n_steps, dt):
    """Integrate x' = NODE_T(t, x) with explicit Euler, fused in one kernel."""
    w_in, b_in, w_h, b_h, w_out, b_out = params
    B = x0.shape[0]
    n_hidden = w_h.shape[0]
    dtype = x0.dtype

    q = x0[:, :d_f]
    q_dot = x0[:, d_f:2 * d_f]
    tau = x0[:, 2 * d_f:]
    u = tau[:, u_index][:, None]
    w_cos = w_in[:d_f]
    w_sin = w_in[d_f:2 * d_f]
    w_qd = w_in[2 * d_f:3 * d_f]
    w_u = w_in[3 * d_f:3 * d_f + 1]

    vmem = pl.BlockSpec(memory_space=pltpu.MemorySpace.VMEM)
    args = [q, q_dot, u, w_cos, w_sin, w_qd, w_u, b_in]
    if n_hidden > 0:
        args += [w_h, b_h]
    args += [w_out, b_out]

    kernel = functools.partial(node_t_euler_kernel, n_hidden=n_hidden,
                               n_steps=n_steps, dt=float(dt))
    qf, qdf = pl.pallas_call(
        kernel,
        out_shape=(jax.ShapeDtypeStruct((B, d_f), dtype),
                   jax.ShapeDtypeStruct((B, d_f), dtype)),
        in_specs=[vmem] * len(args),
        out_specs=(vmem, vmem),
    )(*args)
    # tau is constant along the trajectory (du_dt = 0).
    return jnp.concatenate([qf, qdf, tau], axis=1)


# ---------------------------------------------------------------------------
# Pure-JAX references + demo.
# ---------------------------------------------------------------------------
def init_params(key, d_f, n_layers, n_neurons):
    params_in = 2 * d_f + d_f + 1
    k = jax.random.split(key, 6)
    n_hidden = max(n_layers - 1, 0)
    w_in = jax.random.normal(k[0], (params_in, n_neurons), jnp.float32) * 0.3
    b_in = jax.random.normal(k[1], (1, n_neurons), jnp.float32) * 0.05
    w_h = jax.random.normal(k[2], (n_hidden, n_neurons, n_neurons),
                            jnp.float32) * 0.3
    b_h = jax.random.normal(k[3], (n_hidden, 1, n_neurons), jnp.float32) * 0.05
    w_out = jax.random.normal(k[4], (n_neurons, d_f), jnp.float32) * 0.3
    b_out = jax.random.normal(k[5], (1, d_f), jnp.float32) * 0.05
    return w_in, b_in, w_h, b_h, w_out, b_out


def node_t_reference(t, x, params, *, d_f, u_index):
    del t
    w_in, b_in, w_h, b_h, w_out, b_out = params
    q, q_dot, tau = x[:, :d_f], x[:, d_f:2 * d_f], x[:, 2 * d_f:]
    feat = jnp.concatenate(
        [jnp.cos(q), jnp.sin(q), q_dot, tau[:, u_index][:, None]], axis=1)
    h = jnp.tanh(feat @ w_in + b_in)
    for layer in range(w_h.shape[0]):
        h = jnp.tanh(h @ w_h[layer] + b_h[layer])
    ddx = h @ w_out + b_out
    return jnp.concatenate([q_dot, ddx, jnp.zeros_like(q_dot)], axis=1)


def euler_reference(x0, params, *, d_f, u_index, n_steps, dt):
    x = x0
    for _ in range(n_steps):
        x = x + dt * node_t_reference(0.0, x, params, d_f=d_f, u_index=u_index)
    return x


if __name__ == "__main__":
    n_angles = 2          # d_f
    n_layers = 2          # input layer + 1 hidden block
    n_neurons = 32
    u_index = 0
    d_f = n_angles

    key = jax.random.PRNGKey(0)
    k_x, k_x2, k_p, k_p1 = jax.random.split(key, 4)
    params = init_params(k_p, d_f, n_layers, n_neurons)
    t = jnp.float32(0.0)

    # 1) small batch, single block.
    x_small = jax.random.normal(k_x, (8, 3 * d_f), jnp.float32)
    out = jax.block_until_ready(
        node_t_forward(t, x_small, params, d_f=d_f, u_index=u_index))
    ref = node_t_reference(t, x_small, params, d_f=d_f, u_index=u_index)
    assert out.shape == (8, 3 * d_f)
    assert jnp.allclose(out, ref, atol=1e-4, rtol=1e-4)

    # 2) larger batch -> multi-block grid (padded), weights resident in VMEM.
    x_big = jax.random.normal(k_x2, (600, 3 * d_f), jnp.float32)
    out_big = jax.block_until_ready(
        node_t_forward(t, x_big, params, d_f=d_f, u_index=u_index))
    ref_big = node_t_reference(t, x_big, params, d_f=d_f, u_index=u_index)
    assert out_big.shape == (600, 3 * d_f)
    assert jnp.allclose(out_big, ref_big, atol=1e-4, rtol=1e-4)

    # 3) n_layers == 1 (no hidden blocks) guard.
    params1 = init_params(k_p1, d_f, 1, n_neurons)
    out1 = jax.block_until_ready(
        node_t_forward(t, x_small, params1, d_f=d_f, u_index=u_index))
    ref1 = node_t_reference(t, x_small, params1, d_f=d_f, u_index=u_index)
    assert jnp.allclose(out1, ref1, atol=1e-4, rtol=1e-4)

    # 4) fused Euler rollout: whole solver loop in one pallas_call.
    n_steps, dt = 16, 0.01
    xf = jax.block_until_ready(
        node_t_euler_rollout(x_small, params, d_f=d_f, u_index=u_index,
                             n_steps=n_steps, dt=dt))
    xf_ref = euler_reference(x_small, params, d_f=d_f, u_index=u_index,
                             n_steps=n_steps, dt=dt)
    assert jnp.allclose(xf, xf_ref, atol=1e-4, rtol=1e-4)

    print("KERNEL_OK")
</pallas_src>

<mosaic_0001>
module attributes {stable_mosaic.version = 11 : i64} {
  func.func @node_t_kernel(%arg0: i32, %arg1: memref<8x2xf32, #tpu.memory_space<vmem>>, %arg2: memref<8x2xf32, #tpu.memory_space<vmem>>, %arg3: memref<8x1xf32, #tpu.memory_space<vmem>>, %arg4: memref<2x32xf32, #tpu.memory_space<vmem>>, %arg5: memref<2x32xf32, #tpu.memory_space<vmem>>, %arg6: memref<2x32xf32, #tpu.memory_space<vmem>>, %arg7: memref<1x32xf32, #tpu.memory_space<vmem>>, %arg8: memref<1x32xf32, #tpu.memory_space<vmem>>, %arg9: memref<1x32x32xf32, #tpu.memory_space<vmem>>, %arg10: memref<1x1x32xf32, #tpu.memory_space<vmem>>, %arg11: memref<32x2xf32, #tpu.memory_space<vmem>>, %arg12: memref<1x2xf32, #tpu.memory_space<vmem>>, %arg13: memref<8x6xf32, #tpu.memory_space<vmem>>) attributes {dimension_semantics = [#tpu.dimension_semantics<parallel>], iteration_bounds = array<i64: 1>, scalar_prefetch = 0 : i64, scratch_operands = 0 : i64, tpu.core_type = #tpu.core_type<tc>, window_params = [{transform_indices = @transform_0, window_bounds = array<i64: 8, 2>}, {transform_indices = @transform_1, window_bounds = array<i64: 8, 2>}, {transform_indices = @transform_2, window_bounds = array<i64: 8, 1>}, {pipeline_mode = #tpu.pipeline_mode<synchronous>, transform_indices = @transform_3, window_bounds = array<i64: 2, 32>}, {pipeline_mode = #tpu.pipeline_mode<synchronous>, transform_indices = @transform_4, window_bounds = array<i64: 2, 32>}, {pipeline_mode = #tpu.pipeline_mode<synchronous>, transform_indices = @transform_5, window_bounds = array<i64: 2, 32>}, {pipeline_mode = #tpu.pipeline_mode<synchronous>, transform_indices = @transform_6, window_bounds = array<i64: 1, 32>}, {pipeline_mode = #tpu.pipeline_mode<synchronous>, transform_indices = @transform_7, window_bounds = array<i64: 1, 32>}, {pipeline_mode = #tpu.pipeline_mode<synchronous>, transform_indices = @transform_8, window_bounds = array<i64: 1, 32, 32>}, {pipeline_mode = #tpu.pipeline_mode<synchronous>, transform_indices = @transform_9, window_bounds = array<i64: 1, 1, 32>}, {pipeline_mode = #tpu.pipeline_mode<synchronous>, transform_indices = @transform_10, window_bounds = array<i64: 32, 2>}, {pipeline_mode = #tpu.pipeline_mode<synchronous>, transform_indices = @transform_11, window_bounds = array<i64: 1, 2>}, {transform_indices = @transform_12, window_bounds = array<i64: 8, 6>}]} {
    %c0 = arith.constant 0 : index
    %c0_0 = arith.constant 0 : index
    %0 = vector.load %arg1[%c0, %c0_0] : memref<8x2xf32, #tpu.memory_space<vmem>>, vector<8x2xf32>
    %c0_1 = arith.constant 0 : index
    %c0_2 = arith.constant 0 : index
    %1 = vector.load %arg2[%c0_1, %c0_2] : memref<8x2xf32, #tpu.memory_space<vmem>>, vector<8x2xf32>
    %c0_3 = arith.constant 0 : index
    %c0_4 = arith.constant 0 : index
    %2 = vector.load %arg3[%c0_3, %c0_4] : memref<8x1xf32, #tpu.memory_space<vmem>>, vector<8x1xf32>
    %3 = math.cos %0 : vector<8x2xf32>
    %c0_5 = arith.constant 0 : index
    %c0_6 = arith.constant 0 : index
    %4 = vector.load %arg4[%c0_5, %c0_6] : memref<2x32xf32, #tpu.memory_space<vmem>>, vector<2x32xf32>
    %cst = arith.constant dense<0.000000e+00> : vector<8x32xf32>
    %5 = tpu.matmul %3, %4, %cst {dimension_numbers = #tpu.dot_dimension_numbers<[1], [0], [0], [1], [0, 0, 1, 1], [], []>} : vector<8x2xf32>, vector<2x32xf32>, vector<8x32xf32> -> vector<8x32xf32>
    %6 = math.sin %0 : vector<8x2xf32>
    %c0_7 = arith.constant 0 : index
    %c0_8 = arith.constant 0 : index
    %7 = vector.load %arg5[%c0_7, %c0_8] : memref<2x32xf32, #tpu.memory_space<vmem>>, vector<2x32xf32>
    %cst_9 = arith.constant dense<0.000000e+00> : vector<8x32xf32>
    %8 = tpu.matmul %6, %7, %cst_9 {dimension_numbers = #tpu.dot_dimension_numbers<[1], [0], [0], [1], [0, 0, 1, 1], [], []>} : vector<8x2xf32>, vector<2x32xf32>, vector<8x32xf32> -> vector<8x32xf32>
    %9 = arith.addf %5, %8 : vector<8x32xf32>
    %c0_10 = arith.constant 0 : index
    %c0_11 = arith.constant 0 : index
    %10 = vector.load %arg6[%c0_10, %c0_11] : memref<2x32xf32, #tpu.memory_space<vmem>>, vector<2x32xf32>
    %cst_12 = arith.constant dense<0.000000e+00> : vector<8x32xf32>
    %11 = tpu.matmul %1, %10, %cst_12 {dimension_numbers = #tpu.dot_dimension_numbers<[1], [0], [0], [1], [0, 0, 1, 1], [], []>} : vector<8x2xf32>, vector<2x32xf32>, vector<8x32xf32> -> vector<8x32xf32>
    %12 = arith.addf %9, %11 : vector<8x32xf32>
    %c0_13 = arith.constant 0 : index
    %c0_14 = arith.constant 0 : index
    %13 = vector.load %arg7[%c0_13, %c0_14] : memref<1x32xf32, #tpu.memory_space<vmem>>, vector<1x32xf32>
    %14 = vector.broadcast %2 : vector<8x1xf32> to vector<8x32xf32>
    %15 = vector.broadcast %13 : vector<1x32xf32> to vector<8x32xf32>
    %16 = arith.mulf %14, %15 : vector<8x32xf32>
    %17 = arith.addf %12, %16 : vector<8x32xf32>
    %c0_15 = arith.constant 0 : index
    %c0_16 = arith.constant 0 : index
    %18 = vector.load %arg8[%c0_15, %c0_16] : memref<1x32xf32, #tpu.memory_space<vmem>>, vector<1x32xf32>
    %19 = vector.broadcast %18 : vector<1x32xf32> to vector<8x32xf32>
    %20 = arith.addf %17, %19 : vector<8x32xf32>
    %21 = math.tanh %20 : vector<8x32xf32>
    %c0_17 = arith.constant 0 : index
    %c0_18 = arith.constant 0 : index
    %c0_19 = arith.constant 0 : index
    %22 = vector.load %arg9[%c0_17, %c0_18, %c0_19] : memref<1x32x32xf32, #tpu.memory_space<vmem>>, vector<1x32x32xf32>
    %23 = vector.shape_cast %22 : vector<1x32x32xf32> to vector<32x32xf32>
    %cst_20 = arith.constant dense<0.000000e+00> : vector<8x32xf32>
    %24 = tpu.matmul %21, %23, %cst_20 {dimension_numbers = #tpu.dot_dimension_numbers<[1], [0], [0], [1], [0, 0, 1, 1], [], []>} : vector<8x32xf32>, vector<32x32xf32>, vector<8x32xf32> -> vector<8x32xf32>
    %c0_21 = arith.constant 0 : index
    %c0_22 = arith.constant 0 : index
    %c0_23 = arith.constant 0 : index
    %25 = vector.load %arg10[%c0_21, %c0_22, %c0_23] : memref<1x1x32xf32, #tpu.memory_space<vmem>>, vector<1x1x32xf32>
    %26 = vector.shape_cast %25 : vector<1x1x32xf32> to vector<1x32xf32>
    %27 = vector.broadcast %26 : vector<1x32xf32> to vector<8x32xf32>
    %28 = arith.addf %24, %27 : vector<8x32xf32>
    %29 = math.tanh %28 : vector<8x32xf32>
    %c0_24 = arith.constant 0 : index
    %c0_25 = arith.constant 0 : index
    %30 = vector.load %arg11[%c0_24, %c0_25] : memref<32x2xf32, #tpu.memory_space<vmem>>, vector<32x2xf32>
    %cst_26 = arith.constant dense<0.000000e+00> : vector<8x2xf32>
    %31 = tpu.matmul %29, %30, %cst_26 {dimension_numbers = #tpu.dot_dimension_numbers<[1], [0], [0], [1], [0, 0, 1, 1], [], []>} : vector<8x32xf32>, vector<32x2xf32>, vector<8x2xf32> -> vector<8x2xf32>
    %c0_27 = arith.constant 0 : index
    %c0_28 = arith.constant 0 : index
    %32 = vector.load %arg12[%c0_27, %c0_28] : memref<1x2xf32, #tpu.memory_space<vmem>>, vector<1x2xf32>
    %33 = vector.broadcast %32 : vector<1x2xf32> to vector<8x2xf32>
    %34 = arith.addf %31, %33 : vector<8x2xf32>
    %c0_29 = arith.constant 0 : index
    %c0_30 = arith.constant 0 : index
    %35 = vector.load %arg13[%c0_29, %c0_30] : memref<8x6xf32, #tpu.memory_space<vmem>>, vector<8x2xf32>
    tpu.vector_store %arg13[%c0_29, %c0_30], %1 {strides = array<i32>} : memref<8x6xf32, #tpu.memory_space<vmem>>, vector<8x2xf32>,
    %c0_31 = arith.constant 0 : index
    %c2 = arith.constant 2 : index
    %36 = vector.load %arg13[%c0_31, %c2] : memref<8x6xf32, #tpu.memory_space<vmem>>, vector<8x2xf32>
    tpu.vector_store %arg13[%c0_31, %c2], %34 {strides = array<i32>} : memref<8x6xf32, #tpu.memory_space<vmem>>, vector<8x2xf32>,
    %cst_32 = arith.constant 0.000000e+00 : f32
    %37 = vector.broadcast %cst_32 : f32 to vector<8x2xf32>
    %c0_33 = arith.constant 0 : index
    %c4 = arith.constant 4 : index
    %38 = vector.load %arg13[%c0_33, %c4] : memref<8x6xf32, #tpu.memory_space<vmem>>, vector<8x2xf32>
    tpu.vector_store %arg13[%c0_33, %c4], %37 {strides = array<i32>} : memref<8x6xf32, #tpu.memory_space<vmem>>, vector<8x2xf32>,
    return
  }
  func.func @transform_0(%arg0: i32) -> (i32, i32) {
    %c0_i32 = arith.constant 0 : i32
    %c0_i32_0 = arith.constant 0 : i32
    return %arg0, %c0_i32 : i32, i32
  }
  func.func @transform_1(%arg0: i32) -> (i32, i32) {
    %c0_i32 = arith.constant 0 : i32
    %c0_i32_0 = arith.constant 0 : i32
    return %arg0, %c0_i32 : i32, i32
  }
  func.func @transform_2(%arg0: i32) -> (i32, i32) {
    %c0_i32 = arith.constant 0 : i32
    %c0_i32_0 = arith.constant 0 : i32
    return %arg0, %c0_i32 : i32, i32
  }
  func.func @transform_3(%arg0: i32) -> (i32, i32) {
    %c0_i32 = arith.constant 0 : i32
    %c0_i32_0 = arith.constant 0 : i32
    %c0_i32_1 = arith.constant 0 : i32
    return %c0_i32, %c0_i32_0 : i32, i32
  }
  func.func @transform_4(%arg0: i32) -> (i32, i32) {
    %c0_i32 = arith.constant 0 : i32
    %c0_i32_0 = arith.constant 0 : i32
    %c0_i32_1 = arith.constant 0 : i32
    return %c0_i32, %c0_i32_0 : i32, i32
  }
  func.func @transform_5(%arg0: i32) -> (i32, i32) {
    %c0_i32 = arith.constant 0 : i32
    %c0_i32_0 = arith.constant 0 : i32
    %c0_i32_1 = arith.constant 0 : i32
    return %c0_i32, %c0_i32_0 : i32, i32
  }
  func.func @transform_6(%arg0: i32) -> (i32, i32) {
    %c0_i32 = arith.constant 0 : i32
    %c0_i32_0 = arith.constant 0 : i32
    %c0_i32_1 = arith.constant 0 : i32
    return %c0_i32, %c0_i32_0 : i32, i32
  }
  func.func @transform_7(%arg0: i32) -> (i32, i32) {
    %c0_i32 = arith.constant 0 : i32
    %c0_i32_0 = arith.constant 0 : i32
    %c0_i32_1 = arith.constant 0 : i32
    return %c0_i32, %c0_i32_0 : i32, i32
  }
  func.func @transform_8(%arg0: i32) -> (i32, i32, i32) {
    %c0_i32 = arith.constant 0 : i32
    %c0_i32_0 = arith.constant 0 : i32
    %c0_i32_1 = arith.constant 0 : i32
    %c0_i32_2 = arith.constant 0 : i32
    return %c0_i32, %c0_i32_0, %c0_i32_1 : i32, i32, i32
  }
  func.func @transform_9(%arg0: i32) -> (i32, i32, i32) {
    %c0_i32 = arith.constant 0 : i32
    %c0_i32_0 = arith.constant 0 : i32
    %c0_i32_1 = arith.constant 0 : i32
    %c0_i32_2 = arith.constant 0 : i32
    return %c0_i32, %c0_i32_0, %c0_i32_1 : i32, i32, i32
  }
  func.func @transform_10(%arg0: i32) -> (i32, i32) {
    %c0_i32 = arith.constant 0 : i32
    %c0_i32_0 = arith.constant 0 : i32
    %c0_i32_1 = arith.constant 0 : i32
    return %c0_i32, %c0_i32_0 : i32, i32
  }
  func.func @transform_11(%arg0: i32) -> (i32, i32) {
    %c0_i32 = arith.constant 0 : i32
    %c0_i32_0 = arith.constant 0 : i32
    %c0_i32_1 = arith.constant 0 : i32
    return %c0_i32, %c0_i32_0 : i32, i32
  }
  func.func @transform_12(%arg0: i32) -> (i32, i32) {
    %c0_i32 = arith.constant 0 : i32
    %c0_i32_0 = arith.constant 0 : i32
    return %arg0, %c0_i32 : i32, i32
  }
}

</mosaic_0001>

<llo_original>
// kernel: tpu_custom_call.1
$region0: #{tpu_custom_call.1}
  #allocation0 [shape = 'u32[]', space=smem, size = 0x4, offset = 0x4, fixed_abs, tag = 'smem constant byte address 0x4 - core index']
  #allocation1 [shape = 'u32[144,128]{1,0:T(1,128)}', space=vmem, size = 0x12000, scoped, tag = 'internal scratch']
  %s0 = inlined_call_operand.vmem [shape: f32[8,2], index: 0, kind: input, shape index: {}]
  %s1 = inlined_call_operand.vmem [shape: f32[8,2], index: 1, kind: input, shape index: {}]
  %s2 = inlined_call_operand.vmem [shape: f32[8,1], index: 2, kind: input, shape index: {}]
  %s3 = inlined_call_operand.vmem [shape: f32[2,32], index: 3, kind: input, shape index: {}]
  %s4 = inlined_call_operand.vmem [shape: f32[2,32], index: 4, kind: input, shape index: {}]
  %s5 = inlined_call_operand.vmem [shape: f32[2,32], index: 5, kind: input, shape index: {}]
  %s6 = inlined_call_operand.vmem [shape: f32[1,32], index: 6, kind: input, shape index: {}]
  %s7 = inlined_call_operand.vmem [shape: f32[1,32], index: 7, kind: input, shape index: {}]
  %s8 = inlined_call_operand.vmem [shape: f32[1,32,32], index: 8, kind: input, shape index: {}]
  %s9 = inlined_call_operand.vmem [shape: f32[1,1,32], index: 9, kind: input, shape index: {}]
  %s10 = inlined_call_operand.vmem [shape: f32[32,2], index: 10, kind: input, shape index: {}]
  %s11 = inlined_call_operand.vmem [shape: f32[1,2], index: 11, kind: input, shape index: {}]
  %s12 = inlined_call_operand.hbm [shape: f32[8,6], index: 12, kind: output, shape index: {}]
  %s13 = sld [smem:[#allocation0]]
  $region58: #{tpu_custom_call.1} parent=0
    _
  %s15 = ssub.s32 1, %s13
  %s16 = scalar_select 0, %s15, %s13
  $region1: #{tpu_custom_call.1} parent=0
    #allocation2 [shape = 'u8[4096]{0}', space=vmem, size = 0x1000, scoped, tag = 'output window, operand 0, single buffered']
    #allocation3 [shape = 's32[1]{0}', space=sflag, size = 0x4, scoped, tag = 'scoped memory for tpu_custom_call.1']
    %17 = vsyncpa [#allocation3], 0
    // Predicated region
    $region2: #{tpu_custom_call.1} parent=1 // pred_check
      _
    $region3: #{tpu_custom_call.1} parent=1 // pred_check_branch
      %19 = sbr.rel (0) target = $region5
    $region4: #{tpu_custom_call.1} parent=1 // pred_region
      _
    $region5: #{tpu_custom_call.1} parent=1 // pred_fallthru
      _
    // Predicated region
    $region6: #{tpu_custom_call.1} parent=1 // pred_check
      _
    $region7: #{tpu_custom_call.1} parent=1 // pred_check_branch
      %21 = sbr.rel (0) target = $region9
    $region8: #{tpu_custom_call.1} parent=1 // pred_region
      _
    $region9: #{tpu_custom_call.1} parent=1 // pred_fallthru
      _
    // Predicated region
    $region10: #{tpu_custom_call.1} parent=1 // pred_check
      _
    $region11: #{tpu_custom_call.1} parent=1 // pred_check_branch
      %23 = sbr.rel (0) target = $region13
    $region12: #{tpu_custom_call.1} parent=1 // pred_region
      _
    $region13: #{tpu_custom_call.1} parent=1 // pred_fallthru
      _
    // Predicated region
    $region14: #{tpu_custom_call.1} parent=1 // pred_check
      _
    $region15: #{tpu_custom_call.1} parent=1 // pred_check_branch
      %25 = sbr.rel (0) target = $region17
    $region16: #{tpu_custom_call.1} parent=1 // pred_region
      _
    $region17: #{tpu_custom_call.1} parent=1 // pred_fallthru
      _
    // Predicated region
    $region18: #{tpu_custom_call.1} parent=1 // pred_check
      _
    $region19: #{tpu_custom_call.1} parent=1 // pred_check_branch
      %27 = sbr.rel (0) target = $region21
    $region20: #{tpu_custom_call.1} parent=1 // pred_region
      _
    $region21: #{tpu_custom_call.1} parent=1 // pred_fallthru
      _
    // Predicated region
    $region22: #{tpu_custom_call.1} parent=1 // pred_check
      _
    $region23: #{tpu_custom_call.1} parent=1 // pred_check_branch
      %29 = sbr.rel (0) target = $region25
    $region24: #{tpu_custom_call.1} parent=1 // pred_region
      _
    $region25: #{tpu_custom_call.1} parent=1 // pred_fallthru
      _
    // Predicated region
    $region26: #{tpu_custom_call.1} parent=1 // pred_check
      _
    $region27: #{tpu_custom_call.1} parent=1 // pred_check_branch
      %31 = sbr.rel (0) target = $region29
    $region28: #{tpu_custom_call.1} parent=1 // pred_region
      _
    $region29: #{tpu_custom_call.1} parent=1 // pred_fallthru
      _
    // Predicated region
    $region30: #{tpu_custom_call.1} parent=1 // pred_check
      _
    $region31: #{tpu_custom_call.1} parent=1 // pred_check_branch
      %33 = sbr.rel (0) target = $region33
    $region32: #{tpu_custom_call.1} parent=1 // pred_region
      _
    $region33: #{tpu_custom_call.1} parent=1 // pred_fallthru
      _
    // Predicated region
    $region34: #{tpu_custom_call.1} parent=1 // pred_check
      _
    $region35: #{tpu_custom_call.1} parent=1 // pred_check_branch
      %35 = sbr.rel (0) target = $region37
    $region36: #{tpu_custom_call.1} parent=1 // pred_region
      _
    $region37: #{tpu_custom_call.1} parent=1 // pred_fallthru
      _
    // Predicated region
    $region38: #{tpu_custom_call.1} parent=1 // pred_check
      _
    $region39: #{tpu_custom_call.1} parent=1 // pred_check_branch
      %37 = sbr.rel (0) target = $region41
    $region40: #{tpu_custom_call.1} parent=1 // pred_region
      _
    $region41: #{tpu_custom_call.1} parent=1 // pred_fallthru
      _
    // Predicated region
    $region42: #{tpu_custom_call.1} parent=1 // pred_check
      _
    $region43: #{tpu_custom_call.1} parent=1 // pred_check_branch
      %39 = sbr.rel (0) target = $region45
    $region44: #{tpu_custom_call.1} parent=1 // pred_region
      _
    $region45: #{tpu_custom_call.1} parent=1 // pred_fallthru
      _
    // Predicated region
    $region46: #{tpu_custom_call.1} parent=1 // pred_check
      _
    $region47: #{tpu_custom_call.1} parent=1 // pred_check_branch
      %41 = sbr.rel (0) target = $region49
    $region48: #{tpu_custom_call.1} parent=1 // pred_region
      _
    $region49: #{tpu_custom_call.1} parent=1 // pred_fallthru
      _
    %v42 = vld [vmem:[%s0] sm:$0xff]
    %v43 = vld [vmem:[%s1] sm:$0xff]
    %v44 = vld [vmem:[%s2] sm:$0xff]
    %v45 = vand.u32 2147483647, %v42
    %vm46 = vcmp.le.f32.partialorder %v45, 0.7853982
    %vm47 = vcmp.lt.s32.totalorder %v42, 0
    %v48 = vand.u32 %v42, 2139095040
    %v49 = vshrl.u32 %v48, 23
    %v50 = vsub.s32 %v49, 127
    %v51 = vand.u32 2147483647, %v42
    %v52 = vand.u32 %v51, 8388607
    %v53 = vor.u32 %v52, 8388608
    %v54 = vsub.s32 0, %v53
    %v55 = vadd.s32 %v50, 1
    %vm56 = vcmp.gt.s32.totalorder %v55, 0
    %v57 = vsel %vm56, %v55, 0
    %v58 = vshrl.u32 %v57, 5
    %v59 = vand.u32 %v57, 31
    %v60 = vsub.s32 32, %v59
    %v61 = vshrl.u32 683565275, %v60
    %v62 = vshll.u32 683565275, %v59
    %v63 = vshrl.u32 2475754826, %v60
    %v64 = vor.u32 %v62, %v63
    %v65 = vshll.u32 2475754826, %v59
    %v66 = vshrl.u32 2131351028, %v60
    %v67 = vor.u32 %v65, %v66
    %v68 = vshll.u32 2131351028, %v59
    %v69 = vshrl.u32 2102212464, %v60
    %v70 = vor.u32 %v68, %v69
    %v71 = vshll.u32 2102212464, %v59
    %v72 = vshrl.u32 920167782, %v60
    %v73 = vor.u32 %v71, %v72
    %v74 = vshll.u32 920167782, %v59
    %v75 = vshrl.u32 1326507024, %v60
    %v76 = vor.u32 %v74, %v75
    %vm77 = vcmp.lt.s32.totalorder %v58, 1
    %vm78 = vcmp.lt.s32.totalorder %v58, 2
    %vm79 = vcmp.lt.s32.totalorder %v58, 3
    %vm80 = vcmp.lt.s32.totalorder %v58, 4
    %v81 = vsel %vm77, %v61, %v64
    %v82 = vsel %vm80, %v70, 2102212464
    %v83 = vsel %vm79, %v67, %v82
    %v84 = vsel %vm78, %v81, %v83
    %v85 = vsel %vm77, %v64, %v67
    %v86 = vsel %vm80, %v73, 920167782
    %v87 = vsel %vm79, %v70, %v86
    %v88 = vsel %vm78, %v85, %v87
    %v89 = vsel %vm77, %v67, %v70
    %v90 = vsel %vm80, %v76, 1326507024
    %v91 = vsel %vm79, %v73, %v90
    %v92 = vsel %vm78, %v89, %v91
    %v93 = vshll.u32 %v53, 8
    %v94 = vmul.u32.u64.compose %v93, %v92
    %v95 = vextract.low.u32 %v94
    %v96 = vextract.high.u32 %v94
    %v97 = vmul.u32.u64.compose %v93, %v88
    %v98 = vextract.low.u32 %v97
    %v99 = vextract.high.u32 %v97
    %v100 = vmul.u32 %v93, %v84
    %v101 = vadd.s32 %v96, %v98
    %vm102 = vc.u32 %v96, %v98
    %v103 = vadd.s32 %v99, 1
    %v104 = vsel %vm102, %v103, %v99
    %v105 = vadd.s32 %v100, %v104
    %v106 = vadd.s32 %v105, 536870912
    %v107 = vshrl.u32 %v106, 30
    %v108 = vshll.u32 %v107, 30
    %v109 = vsub.s32 %v105, %v108
    %vm110 = vcmp.lt.s32.totalorder %v109, 0
    %v111 = vsub.s32 0, %v109
    %v112 = vsel %vm110, %v111, %v109
    %v113 = vclz %v112
    %v114 = vsub.s32 %v113, 2
    %vm115 = vcmp.gt.s32.totalorder 0, %v114
    %v116 = vsel %vm115, 0, %v114
    %v117 = vsub.s32 32, %v116
    %v118 = vshll.u32 %v109, %v116
    %v119 = vshrl.u32 %v101, %v117
    %v120 = vor.u32 %v118, %v119
    %v121 = vsub.s32 4294967266, %v116
    %v122 = vadd.s32 %v121, 127
    %v123 = vshll.u32 %v122, 23
    %v124 = vor.u32 4788187, %v123
    %v125 = vand.u32 2147483647, %v124
    %v127 = vcvt.s32.f32 %v120
    %v128 = vmul.f32 %v127, %v125
    %v129 = vxor.u32 %v128, 2147483648
    %v130 = vsel %vm47, %v129, %v128
    %v131 = vsub.s32 4, %v107
    %v132 = vsel %vm47, %v131, %v107
    %v133 = vsel %vm46, %v42, %v130
    %v134 = vsel %vm46, 0, %v132
    %v135 = vcosq.f32.pop %v133
    %v136 = vsinq.f32.pop %v133
    %vm137 = vweird.f32 %v42
    %v138 = vand.u32 %v134, 3
    %vm139 = vcmp.lt.s32.totalorder %v138, 2
    %vm140 = vcmp.eq.s32.totalorder %v138, 0
    %v141 = vxor.u32 %v136, 2147483648
    %v142 = vsel %vm140, %v135, %v141
    %vm143 = vcmp.eq.s32.totalorder %v138, 2
    %v144 = vxor.u32 %v135, 2147483648
    %v145 = vsel %vm143, %v144, %v136
    %v146 = vsel %vm139, %v142, %v145
    %v147 = vsel %vm137, nan, %v146
    %v148 = vld [vmem:[%s3] sm:$0x3]
    %v149 = vand.u32 2147483647, %v42
    %vm150 = vcmp.le.f32.partialorder %v149, 0.7853982
    %vm151 = vcmp.lt.s32.totalorder %v42, 0
    %v152 = vand.u32 %v42, 2139095040
    %v153 = vshrl.u32 %v152, 23
    %v154 = vsub.s32 %v153, 127
    %v155 = vand.u32 2147483647, %v42
    %v156 = vand.u32 %v155, 8388607
    %v157 = vor.u32 %v156, 8388608
    %v158 = vsub.s32 0, %v157
    %v159 = vadd.s32 %v154, 1
    %vm160 = vcmp.gt.s32.totalorder %v159, 0
    %v161 = vsel %vm160, %v159, 0
    %v162 = vshrl.u32 %v161, 5
    %v163 = vand.u32 %v161, 31
    %v164 = vsub.s32 32, %v163
    %v165 = vshrl.u32 683565275, %v164
    %v166 = vshll.u32 683565275, %v163
    %v167 = vshrl.u32 2475754826, %v164
    %v168 = vor.u32 %v166, %v167
    %v169 = vshll.u32 2475754826, %v163
    %v170 = vshrl.u32 2131351028, %v164
    %v171 = vor.u32 %v169, %v170
    %v172 = vshll.u32 2131351028, %v163
    %v173 = vshrl.u32 2102212464, %v164
    %v174 = vor.u32 %v172, %v173
    %v175 = vshll.u32 2102212464, %v163
    %v176 = vshrl.u32 920167782, %v164
    %v177 = vor.u32 %v175, %v176
    %v178 = vshll.u32 920167782, %v163
    %v179 = vshrl.u32 1326507024, %v164
    %v180 = vor.u32 %v178, %v179
    %vm181 = vcmp.lt.s32.totalorder %v162, 1
    %vm182 = vcmp.lt.s32.totalorder %v162, 2
    %vm183 = vcmp.lt.s32.totalorder %v162, 3
    %vm184 = vcmp.lt.s32.totalorder %v162, 4
    %v185 = vsel %vm181, %v165, %v168
    %v186 = vsel %vm184, %v174, 2102212464
    %v187 = vsel %vm183, %v171, %v186
    %v188 = vsel %vm182, %v185, %v187
    %v189 = vsel %vm181, %v168, %v171
    %v190 = vsel %vm184, %v177, 920167782
    %v191 = vsel %vm183, %v174, %v190
    %v192 = vsel %vm182, %v189, %v191
    %v193 = vsel %vm181, %v171, %v174
    %v194 = vsel %vm184, %v180, 1326507024
    %v195 = vsel %vm183, %v177, %v194
    %v196 = vsel %vm182, %v193, %v195
    %v197 = vshll.u32 %v157, 8
    %v198 = vmul.u32.u64.compose %v197, %v196
    %v199 = vextract.low.u32 %v198
    %v200 = vextract.high.u32 %v198
    %v201 = vmul.u32.u64.compose %v197, %v192
    %v202 = vextract.low.u32 %v201
    %v203 = vextract.high.u32 %v201
    %v204 = vmul.u32 %v197, %v188
    %v205 = vadd.s32 %v200, %v202
    %vm206 = vc.u32 %v200, %v202
    %v207 = vadd.s32 %v203, 1
    %v208 = vsel %vm206, %v207, %v203
    %v209 = vadd.s32 %v204, %v208
    %v210 = vadd.s32 %v209, 536870912
    %v211 = vshrl.u32 %v210, 30
    %v212 = vshll.u32 %v211, 30
    %v213 = vsub.s32 %v209, %v212
    %vm214 = vcmp.lt.s32.totalorder %v213, 0
    %v215 = vsub.s32 0, %v213
    %v216 = vsel %vm214, %v215, %v213
    %v217 = vclz %v216
    %v218 = vsub.s32 %v217, 2
    %vm219 = vcmp.gt.s32.totalorder 0, %v218
    %v220 = vsel %vm219, 0, %v218
    %v221 = vsub.s32 32, %v220
    %v222 = vshll.u32 %v213, %v220
    %v223 = vshrl.u32 %v205, %v221
    %v224 = vor.u32 %v222, %v223
    %v225 = vsub.s32 4294967266, %v220
    %v226 = vadd.s32 %v225, 127
    %v227 = vshll.u32 %v226, 23
    %v228 = vor.u32 4788187, %v227
    %v229 = vand.u32 2147483647, %v228
    %v231 = vcvt.s32.f32 %v224
    %v232 = vmul.f32 %v231, %v229
    %v233 = vxor.u32 %v232, 2147483648
    %v234 = vsel %vm151, %v233, %v232
    %v235 = vsub.s32 4, %v211
    %v236 = vsel %vm151, %v235, %v211
    %v237 = vsel %vm150, %v42, %v234
    %v238 = vsel %vm150, 0, %v236
    %v239 = vcosq.f32.pop %v237
    %v240 = vsinq.f32.pop %v237
    %vm241 = vweird.f32 %v42
    %v242 = vadd.s32 %v238, 3
    %v243 = vand.u32 %v242, 3
    %vm244 = vcmp.lt.s32.totalorder %v243, 2
    %vm245 = vcmp.eq.s32.totalorder %v243, 0
    %v246 = vxor.u32 %v240, 2147483648
    %v247 = vsel %vm245, %v239, %v246
    %vm248 = vcmp.eq.s32.totalorder %v243, 2
    %v249 = vxor.u32 %v239, 2147483648
    %v250 = vsel %vm248, %v249, %v240
    %v251 = vsel %vm244, %v247, %v250
    %v252 = vsel %vm241, nan, %v251
    %v253 = vld [vmem:[%s4] sm:$0x3]
    %vm254 = vcmask 15360
    %v256 = vsel %vm254, %v252, 0
    %vm258 = vcmask 1041408
    %v260 = vsel %vm258, %v253, 0
    %262 = vmatprep.subr.mxu0 0.0
    %263 = vmatpush1.msra.mxu0 %v260
    %264 = vmatprep.subr.mxu0 0.0
    %265 = vmatpush1.msra.mxu0 0.0
    %266 = vmatprep.subr.mxu0 0.0
    %267 = vmatpush1.msra.mxu0 0.0
    %268 = vmatprep.subr.mxu0 0.0
    %269 = vmatpush1.msra.mxu0 0.0
    %270 = vmatprep.subr.mxu0 0.0
    %271 = vmatpush1.msra.mxu0 0.0
    %272 = vmatprep.subr.mxu0 0.0
    %273 = vmatpush1.msra.mxu0 0.0
    %274 = vmatprep.subr.mxu0 0.0
    %275 = vmatpush1.msra.mxu0 0.0
    %276 = vmatprep.subr.mxu0 0.0
    %277 = vmatpush1.msra.mxu0 0.0
    %278 = vmatprep.subr.mxu0 0.0
    %279 = vmatpush1.msra.mxu0 0.0
    %280 = vmatprep.subr.mxu0 0.0
    %281 = vmatpush1.msra.mxu0 0.0
    %282 = vmatprep.subr.mxu0 0.0
    %283 = vmatpush1.msra.mxu0 0.0
    %284 = vmatprep.subr.mxu0 0.0
    %285 = vmatpush1.msra.mxu0 0.0
    %286 = vmatprep.subr.mxu0 0.0
    %287 = vmatpush1.msra.mxu0 0.0
    %288 = vmatprep.subr.mxu0 0.0
    %289 = vmatpush1.msra.mxu0 0.0
    %290 = vmatprep.subr.mxu0 0.0
    %291 = vmatpush1.msra.mxu0 0.0
    %292 = vmatprep.subr.mxu0 0.0
    %293 = vmatpush1.msra.mxu0 0.0
    %294 = vmatprep.subr.mxu0 0.0
    %295 = vmatpush1.msra.mxu0 0.0
    %296 = vmatprep.subr.mxu0 0.0
    %297 = vmatpush1.msra.mxu0 0.0
    %298 = vmatprep.subr.mxu0 0.0
    %299 = vmatpush1.msra.mxu0 0.0
    %300 = vmatprep.subr.mxu0 0.0
    %301 = vmatpush1.msra.mxu0 0.0
    %302 = vmatprep.subr.mxu0 0.0
    %303 = vmatpush1.msra.mxu0 0.0
    %304 = vmatprep.subr.mxu0 0.0
    %305 = vmatpush1.msra.mxu0 0.0
    %306 = vmatprep.subr.mxu0 0.0
    %307 = vmatpush1.msra.mxu0 0.0
    %308 = vmatprep.subr.mxu0 0.0
    %309 = vmatpush1.msra.mxu0 0.0
    %310 = vmatprep.subr.mxu0 0.0
    %311 = vmatpush1.msra.mxu0 0.0
    %312 = vmatprep.subr.mxu0 0.0
    %313 = vmatpush1.msra.mxu0 0.0
    %314 = vmatprep.subr.mxu0 0.0
    %315 = vmatpush1.msra.mxu0 0.0
    %316 = vmatprep.subr.mxu0 0.0
    %317 = vmatpush1.msra.mxu0 0.0
    %318 = vmatprep.subr.mxu0 0.0
    %319 = vmatpush1.msra.mxu0 0.0
    %320 = vmatprep.subr.mxu0 0.0
    %321 = vmatpush1.msra.mxu0 0.0
    %322 = vmatprep.subr.mxu0 0.0
    %323 = vmatpush1.msra.mxu0 0.0
    %324 = vmatprep.subr.mxu0 0.0
    %325 = vmatpush1.msra.mxu0 0.0
    %326 = vmatprep.mubr.f32.mxu0 0.0
    %327 = vmatmul.mubr.f32.gmra.mrb[0].mxu0 %v256
    %v328 = vpop.f32.mrb[0].mxu0
    %v329 = vadd.f32 0.0, %v328
    %v330 = vpop.f32.mrb[0].mxu0
    %331 = vdwg.mxu0
    %v333 = vsel %vm254, %v147, 0
    %v336 = vsel %vm258, %v148, 0
    %338 = vmatprep.subr.mxu0 0.0
    %339 = vmatpush1.msra.mxu0 %v336
    %340 = vmatprep.subr.mxu0 0.0
    %341 = vmatpush1.msra.mxu0 0.0
    %342 = vmatprep.subr.mxu0 0.0
    %343 = vmatpush1.msra.mxu0 0.0
    %344 = vmatprep.subr.mxu0 0.0
    %345 = vmatpush1.msra.mxu0 0.0
    %346 = vmatprep.subr.mxu0 0.0
    %347 = vmatpush1.msra.mxu0 0.0
    %348 = vmatprep.subr.mxu0 0.0
    %349 = vmatpush1.msra.mxu0 0.0
    %350 = vmatprep.subr.mxu0 0.0
    %351 = vmatpush1.msra.mxu0 0.0
    %352 = vmatprep.subr.mxu0 0.0
    %353 = vmatpush1.msra.mxu0 0.0
    %354 = vmatprep.subr.mxu0 0.0
    %355 = vmatpush1.msra.mxu0 0.0
    %356 = vmatprep.subr.mxu0 0.0
    %357 = vmatpush1.msra.mxu0 0.0
    %358 = vmatprep.subr.mxu0 0.0
    %359 = vmatpush1.msra.mxu0 0.0
    %360 = vmatprep.subr.mxu0 0.0
    %361 = vmatpush1.msra.mxu0 0.0
    %362 = vmatprep.subr.mxu0 0.0
    %363 = vmatpush1.msra.mxu0 0.0
    %364 = vmatprep.subr.mxu0 0.0
    %365 = vmatpush1.msra.mxu0 0.0
    %366 = vmatprep.subr.mxu0 0.0
    %367 = vmatpush1.msra.mxu0 0.0
    %368 = vmatprep.subr.mxu0 0.0
    %369 = vmatpush1.msra.mxu0 0.0
    %370 = vmatprep.subr.mxu0 0.0
    %371 = vmatpush1.msra.mxu0 0.0
    %372 = vmatprep.subr.mxu0 0.0
    %373 = vmatpush1.msra.mxu0 0.0
    %374 = vmatprep.subr.mxu0 0.0
    %375 = vmatpush1.msra.mxu0 0.0
    %376 = vmatprep.subr.mxu0 0.0
    %377 = vmatpush1.msra.mxu0 0.0
    %378 = vmatprep.subr.mxu0 0.0
    %379 = vmatpush1.msra.mxu0 0.0
    %380 = vmatprep.subr.mxu0 0.0
    %381 = vmatpush1.msra.mxu0 0.0
    %382 = vmatprep.subr.mxu0 0.0
    %383 = vmatpush1.msra.mxu0 0.0
    %384 = vmatprep.subr.mxu0 0.0
    %385 = vmatpush1.msra.mxu0 0.0
    %386 = vmatprep.subr.mxu0 0.0
    %387 = vmatpush1.msra.mxu0 0.0
    %388 = vmatprep.subr.mxu0 0.0
    %389 = vmatpush1.msra.mxu0 0.0
    %390 = vmatprep.subr.mxu0 0.0
    %391 = vmatpush1.msra.mxu0 0.0
    %392 = vmatprep.subr.mxu0 0.0
    %393 = vmatpush1.msra.mxu0 0.0
    %394 = vmatprep.subr.mxu0 0.0
    %395 = vmatpush1.msra.mxu0 0.0
    %396 = vmatprep.subr.mxu0 0.0
    %397 = vmatpush1.msra.mxu0 0.0
    %398 = vmatprep.subr.mxu0 0.0
    %399 = vmatpush1.msra.mxu0 0.0
    %400 = vmatprep.subr.mxu0 0.0
    %401 = vmatpush1.msra.mxu0 0.0
    %402 = vmatprep.mubr.f32.mxu0 0.0
    %403 = vmatmul.mubr.f32.gmra.mrb[0].mxu0 %v333
    %v404 = vpop.f32.mrb[0].mxu0
    %v405 = vadd.f32 %v329, %v404
    %v406 = vpop.f32.mrb[0].mxu0
    %407 = vdwg.mxu0
    %v408 = vld [vmem:[%s5] sm:$0x3]
    %v410 = vsel %vm254, %v43, 0
    %v413 = vsel %vm258, %v408, 0
    %415 = vmatprep.subr.mxu0 0.0
    %416 = vmatpush1.msra.mxu0 %v413
    %417 = vmatprep.subr.mxu0 0.0
    %418 = vmatpush1.msra.mxu0 0.0
    %419 = vmatprep.subr.mxu0 0.0
    %420 = vmatpush1.msra.mxu0 0.0
    %421 = vmatprep.subr.mxu0 0.0
    %422 = vmatpush1.msra.mxu0 0.0
    %423 = vmatprep.subr.mxu0 0.0
    %424 = vmatpush1.msra.mxu0 0.0
    %425 = vmatprep.subr.mxu0 0.0
    %426 = vmatpush1.msra.mxu0 0.0
    %427 = vmatprep.subr.mxu0 0.0
    %428 = vmatpush1.msra.mxu0 0.0
    %429 = vmatprep.subr.mxu0 0.0
    %430 = vmatpush1.msra.mxu0 0.0
    %431 = vmatprep.subr.mxu0 0.0
    %432 = vmatpush1.msra.mxu0 0.0
    %433 = vmatprep.subr.mxu0 0.0
    %434 = vmatpush1.msra.mxu0 0.0
    %435 = vmatprep.subr.mxu0 0.0
    %436 = vmatpush1.msra.mxu0 0.0
    %437 = vmatprep.subr.mxu0 0.0
    %438 = vmatpush1.msra.mxu0 0.0
    %439 = vmatprep.subr.mxu0 0.0
    %440 = vmatpush1.msra.mxu0 0.0
    %441 = vmatprep.subr.mxu0 0.0
    %442 = vmatpush1.msra.mxu0 0.0
    %443 = vmatprep.subr.mxu0 0.0
    %444 = vmatpush1.msra.mxu0 0.0
    %445 = vmatprep.subr.mxu0 0.0
    %446 = vmatpush1.msra.mxu0 0.0
    %447 = vmatprep.subr.mxu0 0.0
    %448 = vmatpush1.msra.mxu0 0.0
    %449 = vmatprep.subr.mxu0 0.0
    %450 = vmatpush1.msra.mxu0 0.0
    %451 = vmatprep.subr.mxu0 0.0
    %452 = vmatpush1.msra.mxu0 0.0
    %453 = vmatprep.subr.mxu0 0.0
    %454 = vmatpush1.msra.mxu0 0.0
    %455 = vmatprep.subr.mxu0 0.0
    %456 = vmatpush1.msra.mxu0 0.0
    %457 = vmatprep.subr.mxu0 0.0
    %458 = vmatpush1.msra.mxu0 0.0
    %459 = vmatprep.subr.mxu0 0.0
    %460 = vmatpush1.msra.mxu0 0.0
    %461 = vmatprep.subr.mxu0 0.0
    %462 = vmatpush1.msra.mxu0 0.0
    %463 = vmatprep.subr.mxu0 0.0
    %464 = vmatpush1.msra.mxu0 0.0
    %465 = vmatprep.subr.mxu0 0.0
    %466 = vmatpush1.msra.mxu0 0.0
    %467 = vmatprep.subr.mxu0 0.0
    %468 = vmatpush1.msra.mxu0 0.0
    %469 = vmatprep.subr.mxu0 0.0
    %470 = vmatpush1.msra.mxu0 0.0
    %471 = vmatprep.subr.mxu0 0.0
    %472 = vmatpush1.msra.mxu0 0.0
    %473 = vmatprep.subr.mxu0 0.0
    %474 = vmatpush1.msra.mxu0 0.0
    %475 = vmatprep.subr.mxu0 0.0
    %476 = vmatpush1.msra.mxu0 0.0
    %477 = vmatprep.subr.mxu0 0.0
    %478 = vmatpush1.msra.mxu0 0.0
    %479 = vmatprep.mubr.f32.mxu0 0.0
    %480 = vmatmul.mubr.f32.gmra.mrb[0].mxu0 %v410
    %v481 = vpop.f32.mrb[0].mxu0
    %v482 = vadd.f32 0.0, %v481
    %v483 = vpop.f32.mrb[0].mxu0
    %484 = vdwg.mxu0
    %v485 = vadd.f32 %v405, %v482
    %v486 = vld [vmem:[%s6] sm:$0x1]
    %488 = vset.pattern.permute.xlu0 0
    %489 = vperm.xlu0 %488, %v44
    %v490 = vpop.permute.xlu0 %489
    %v493 = vlaneseq
    %v494 = vshrl.u32 %v493, 7
    %v495 = vsub.s32 0, %v494
    %v496 = vrot.slane %v486, %v495
    %v498 = vmul.f32 %v490, %v496
    %v499 = vadd.f32 %v485, %v498
    %v500 = vld [vmem:[%s7] sm:$0x1]
    %v502 = vlaneseq
    %v503 = vshrl.u32 %v502, 7
    %v504 = vsub.s32 0, %v503
    %v505 = vrot.slane %v500, %v504
    %v507 = vadd.f32 %v499, %v505
    %v508 = vtanh.pop %v507
    %v509 = vld [vmem:[%s8] sm:$0xff]
    %v510 = vld [vmem:[%s8 + $0x8] sm:$0xff]
    %v511 = vld [vmem:[%s8 + $0x10] sm:$0xff]
    %v512 = vld [vmem:[%s8 + $0x18] sm:$0xff]
    %v513 = vld [vmem:[%s9] sm:$0x1]
    %v515 = vlaneseq
    %v516 = vshrl.u32 %v515, 7
    %v517 = vsub.s32 0, %v516
    %v518 = vrot.slane %v513, %v517
    %vm520 = vcmask 261120
    %v522 = vsel %vm520, %v508, 0
    %524 = vmatprep.subr.mxu0 0.0
    %525 = vmatpush1.msra.mxu0 %v509
    %526 = vmatprep.subr.mxu0 0.0
    %527 = vmatpush1.msra.mxu0 %v510
    %528 = vmatprep.subr.mxu0 0.0
    %529 = vmatpush1.msra.mxu0 %v511
    %530 = vmatprep.subr.mxu0 0.0
    %531 = vmatpush1.msra.mxu0 %v512
    %532 = vmatprep.subr.mxu0 0.0
    %533 = vmatpush1.msra.mxu0 0.0
    %534 = vmatprep.subr.mxu0 0.0
    %535 = vmatpush1.msra.mxu0 0.0
    %536 = vmatprep.subr.mxu0 0.0
    %537 = vmatpush1.msra.mxu0 0.0
    %538 = vmatprep.subr.mxu0 0.0
    %539 = vmatpush1.msra.mxu0 0.0
    %540 = vmatprep.subr.mxu0 0.0
    %541 = vmatpush1.msra.mxu0 0.0
    %542 = vmatprep.subr.mxu0 0.0
    %543 = vmatpush1.msra.mxu0 0.0
    %544 = vmatprep.subr.mxu0 0.0
    %545 = vmatpush1.msra.mxu0 0.0
    %546 = vmatprep.subr.mxu0 0.0
    %547 = vmatpush1.msra.mxu0 0.0
    %548 = vmatprep.subr.mxu0 0.0
    %549 = vmatpush1.msra.mxu0 0.0
    %550 = vmatprep.subr.mxu0 0.0
    %551 = vmatpush1.msra.mxu0 0.0
    %552 = vmatprep.subr.mxu0 0.0
    %553 = vmatpush1.msra.mxu0 0.0
    %554 = vmatprep.subr.mxu0 0.0
    %555 = vmatpush1.msra.mxu0 0.0
    %556 = vmatprep.subr.mxu0 0.0
    %557 = vmatpush1.msra.mxu0 0.0
    %558 = vmatprep.subr.mxu0 0.0
    %559 = vmatpush1.msra.mxu0 0.0
    %560 = vmatprep.subr.mxu0 0.0
    %561 = vmatpush1.msra.mxu0 0.0
    %562 = vmatprep.subr.mxu0 0.0
    %563 = vmatpush1.msra.mxu0 0.0
    %564 = vmatprep.subr.mxu0 0.0
    %565 = vmatpush1.msra.mxu0 0.0
    %566 = vmatprep.subr.mxu0 0.0
    %567 = vmatpush1.msra.mxu0 0.0
    %568 = vmatprep.subr.mxu0 0.0
    %569 = vmatpush1.msra.mxu0 0.0
    %570 = vmatprep.subr.mxu0 0.0
    %571 = vmatpush1.msra.mxu0 0.0
    %572 = vmatprep.subr.mxu0 0.0
    %573 = vmatpush1.msra.mxu0 0.0
    %574 = vmatprep.subr.mxu0 0.0
    %575 = vmatpush1.msra.mxu0 0.0
    %576 = vmatprep.subr.mxu0 0.0
    %577 = vmatpush1.msra.mxu0 0.0
    %578 = vmatprep.subr.mxu0 0.0
    %579 = vmatpush1.msra.mxu0 0.0
    %580 = vmatprep.subr.mxu0 0.0
    %581 = vmatpush1.msra.mxu0 0.0
    %582 = vmatprep.subr.mxu0 0.0
    %583 = vmatpush1.msra.mxu0 0.0
    %584 = vmatprep.subr.mxu0 0.0
    %585 = vmatpush1.msra.mxu0 0.0
    %586 = vmatprep.subr.mxu0 0.0
    %587 = vmatpush1.msra.mxu0 0.0
    %588 = vmatprep.mubr.f32.mxu0 0.0
    %589 = vmatmul.mubr.f32.gmra.mrb[0].mxu0 %v522
    %v590 = vpop.f32.mrb[0].mxu0
    %v591 = vadd.f32 %v518, %v590
    %v592 = vpop.f32.mrb[0].mxu0
    %593 = vdwg.mxu0
    %v594 = vtanh.pop %v591
    %v595 = vld [vmem:[%s10] sm:$0xff]
    %v596 = vld [vmem:[%s10 + $0x8] sm:$0xff]
    %v597 = vld [vmem:[%s10 + $0x10] sm:$0xff]
    %v598 = vld [vmem:[%s10 + $0x18] sm:$0xff]
    %v599 = vld [vmem:[%s11] sm:$0x1]
    %v601 = vlaneseq
    %v602 = vshrl.u32 %v601, 7
    %v603 = vsub.s32 0, %v602
    %v604 = vrot.slane %v599, %v603
    %v607 = vsel %vm520, %v594, 0
    %609 = vmatprep.subr.mxu0 0.0
    %610 = vmatpush1.msra.mxu0 %v595
    %611 = vmatprep.subr.mxu0 0.0
    %612 = vmatpush1.msra.mxu0 %v596
    %613 = vmatprep.subr.mxu0 0.0
    %614 = vmatpush1.msra.mxu0 %v597
    %615 = vmatprep.subr.mxu0 0.0
    %616 = vmatpush1.msra.mxu0 %v598
    %617 = vmatprep.subr.mxu0 0.0
    %618 = vmatpush1.msra.mxu0 0.0
    %619 = vmatprep.subr.mxu0 0.0
    %620 = vmatpush1.msra.mxu0 0.0
    %621 = vmatprep.subr.mxu0 0.0
    %622 = vmatpush1.msra.mxu0 0.0
    %623 = vmatprep.subr.mxu0 0.0
    %624 = vmatpush1.msra.mxu0 0.0
    %625 = vmatprep.subr.mxu0 0.0
    %626 = vmatpush1.msra.mxu0 0.0
    %627 = vmatprep.subr.mxu0 0.0
    %628 = vmatpush1.msra.mxu0 0.0
    %629 = vmatprep.subr.mxu0 0.0
    %630 = vmatpush1.msra.mxu0 0.0
    %631 = vmatprep.subr.mxu0 0.0
    %632 = vmatpush1.msra.mxu0 0.0
    %633 = vmatprep.subr.mxu0 0.0
    %634 = vmatpush1.msra.mxu0 0.0
    %635 = vmatprep.subr.mxu0 0.0
    %636 = vmatpush1.msra.mxu0 0.0
    %637 = vmatprep.subr.mxu0 0.0
    %638 = vmatpush1.msra.mxu0 0.0
    %639 = vmatprep.subr.mxu0 0.0
    %640 = vmatpush1.msra.mxu0 0.0
    %641 = vmatprep.subr.mxu0 0.0
    %642 = vmatpush1.msra.mxu0 0.0
    %643 = vmatprep.subr.mxu0 0.0
    %644 = vmatpush1.msra.mxu0 0.0
    %645 = vmatprep.subr.mxu0 0.0
    %646 = vmatpush1.msra.mxu0 0.0
    %647 = vmatprep.subr.mxu0 0.0
    %648 = vmatpush1.msra.mxu0 0.0
    %649 = vmatprep.subr.mxu0 0.0
    %650 = vmatpush1.msra.mxu0 0.0
    %651 = vmatprep.subr.mxu0 0.0
    %652 = vmatpush1.msra.mxu0 0.0
    %653 = vmatprep.subr.mxu0 0.0
    %654 = vmatpush1.msra.mxu0 0.0
    %655 = vmatprep.subr.mxu0 0.0
    %656 = vmatpush1.msra.mxu0 0.0
    %657 = vmatprep.subr.mxu0 0.0
    %658 = vmatpush1.msra.mxu0 0.0
    %659 = vmatprep.subr.mxu0 0.0
    %660 = vmatpush1.msra.mxu0 0.0
    %661 = vmatprep.subr.mxu0 0.0
    %662 = vmatpush1.msra.mxu0 0.0
    %663 = vmatprep.subr.mxu0 0.0
    %664 = vmatpush1.msra.mxu0 0.0
    %665 = vmatprep.subr.mxu0 0.0
    %666 = vmatpush1.msra.mxu0 0.0
    %667 = vmatprep.subr.mxu0 0.0
    %668 = vmatpush1.msra.mxu0 0.0
    %669 = vmatprep.subr.mxu0 0.0
    %670 = vmatpush1.msra.mxu0 0.0
    %671 = vmatprep.subr.mxu0 0.0
    %672 = vmatpush1.msra.mxu0 0.0
    %673 = vmatprep.mubr.f32.mxu0 0.0
    %674 = vmatmul.mubr.f32.gmra.mrb[0].mxu0 %v607
    %v675 = vpop.f32.mrb[0].mxu0
    %v676 = vadd.f32 %v604, %v675
    %v677 = vpop.f32.mrb[0].mxu0
    %678 = vdwg.mxu0
    %679 = vst.msk [vmem:[#allocation2] sm:$0xff] %vm254, %v43
    %681 = vrot.lane.b32.xlu0 %v676, 2
    %v682 = vpop.permute.xlu0 %681
    %vm684 = vcmask 31760
    %685 = vst.msk [vmem:[#allocation2] sm:$0xff] %vm684, %v682
    %vm686 = vcmask 48160
    %687 = vst.msk [vmem:[#allocation2] sm:$0xff] %vm686, 0.0
    // Predicated region
    $region50: #{tpu_custom_call.1} parent=1 // pred_check
      _
    $region51: #{tpu_custom_call.1} parent=1 // pred_check_branch
      %689 = sbr.rel (0) target = $region53
    $region52: #{tpu_custom_call.1} parent=1 // pred_region
      %s691 = ssub.s32 128, 128
      %692 = vsyncadd [#allocation3], %s691
      %s694 = sshll.u32 [#allocation2], 4
      %s695 = int_to_ptr.vmem [resolvable:$true] %s694
      %697 = dma.vmem_to_hbm [thread:$0]  %s695, 128, %s12, [#allocation3]
    $region53: #{tpu_custom_call.1} parent=1 // pred_fallthru
      _
    // Predicated region
    $region54: #{tpu_custom_call.1} parent=1 // pred_check
      _
    $region55: #{tpu_custom_call.1} parent=1 // pred_check_branch
      %699 = sbr.rel (0) target = $region57
    $region56: #{tpu_custom_call.1} parent=1 // pred_region
      %700 = dma.done [#allocation3], 128
    $region57: #{tpu_custom_call.1} parent=1 // pred_fallthru
      _
    %701 = vsyncpa [#allocation3], 1

</llo_original>
